<compile_context>
chip_gen: v5e
topology: v5e:2x2
jax: 0.10.0
libtpu: 0.0.40
codegen_flags: <defaults>
</compile_context>

<pallas_src>
import jax
import jax.numpy as jnp
from jax import lax
from jax.experimental import pallas as pl
from jax.experimental.pallas import tpu as pltpu


def _round_up(x, m):
    return ((x + m - 1) // m) * m


def _lane_pad(c):
    return _round_up(max(int(c), 1), 128)


def _final_predictor_kernel(feat_ref, et_ref, emb_ref, out_ref):
    te = feat_ref.shape[0]           # edges in this tile
    k = emb_ref.shape[0]             # relation rows (padded to a 128 multiple)

    # Embedding gather as a one-hot x table matmul on the MXU.  Edge ids arrive
    # lane-major as a (1, te) row, so build the one-hot transposed (k, te)
    # (lane-dense compare against a sublane iota), then flip it on the XLU
    # (which has slack in this DMA-bound kernel) to feed a plain
    # (te, k) x (k, R) matmul.
    # NOTE: ids outside [0, num_rels) gather an all-zero embedding row instead
    # of raising like nn.Embedding; garbage ids in the ragged last tile are
    # harmless because their output rows are masked on writeback.
    rel_iota = lax.broadcasted_iota(jnp.int32, (k, te), 0)
    onehot_t = (rel_iota == et_ref[...]).astype(jnp.float32)        # (k, te)
    emb = jnp.dot(onehot_t.T, emb_ref[...],
                  preferred_element_type=jnp.float32)               # (te, R)

    # Single fused lane-dense store: packed node features followed by the
    # gathered relation embedding.  Only the final out_dim % 128 tail of the
    # row is a masked store.
    out_ref[...] = jnp.concatenate(
        [feat_ref[...].astype(jnp.float32), emb], axis=1).astype(out_ref.dtype)


def final_predictor_u_op_v(src_intra, dst_intra, src_repr, dst_repr,
                           edge_type, rel_emb, *, max_edge_tile=8192):
    """Pallas implementation of FinalPredictor.u_op_v 'score' computation."""
    E, D1 = src_intra.shape
    _, D2 = src_repr.shape
    num_rels, R = rel_emb.shape
    feat_dim = 2 * D1 + 2 * D2
    out_dim = feat_dim + R
    out_dtype = jnp.result_type(src_intra.dtype, dst_intra.dtype,
                                src_repr.dtype, dst_repr.dtype, rel_emb.dtype)

    # ---- layout plumbing (no extra semantics) --------------------------------
    # Pack the four node-feature segments into one lane-dense (E, feat_dim)
    # slab so each DMA'd block has a >=128 minor dim, and keep edge ids as a
    # lane-major (1, E) row instead of a single-lane (E, 1) column.
    feats = jnp.concatenate([src_intra, dst_intra, src_repr, dst_repr], axis=1)
    et_row = edge_type.astype(jnp.int32).reshape(1, E)

    # Relation table: pad rows to a lane-dense multiple of 128 (>=128) so the
    # iota/compare is lane-dense and the MXU K is 128-aligned; pre-cast to the
    # matmul dtype ONCE here instead of every grid step.
    k_pad = max(128, _round_up(num_rels, 128))
    rel_f32 = rel_emb.astype(jnp.float32)
    if k_pad != num_rels:
        rel_f32 = jnp.zeros((k_pad, R), jnp.float32).at[:num_rels].set(rel_f32)

    # ---- tile sizing straight from this generation's VMEM --------------------
    try:
        vmem_cap = int(pltpu.get_tpu_info().vmem_capacity_bytes)
    except Exception:  # pragma: no cover - conservative fallback (v7x per-TC)
        vmem_cap = 64 * 1024 * 1024
    itemsize = 4  # budget in f32 bytes
    table_bytes = 2 * k_pad * _lane_pad(R) * itemsize      # (double-buffered)
    per_row = itemsize * (
        2 * _lane_pad(feat_dim)       # packed feature block (double buffered)
        + 2 * _lane_pad(out_dim)      # output block (double buffered)
        + 2 * k_pad                   # one-hot + its transpose (kernel temps)
        + _lane_pad(R)                # gathered embedding temp
        + _lane_pad(out_dim)          # fused concat value before the store
        + 64)                         # (1, tile) edge-id row (generous)
    budget = max(vmem_cap // 2 - table_bytes, per_row * 128)
    tile = (budget // per_row) // 128 * 128
    # Multiples of 128 also satisfy bf16 (16) / int8 (32) sublane packing.
    tile = max(128, min(tile, int(max_edge_tile), _round_up(E, 128)))

    grid = (pl.cdiv(E, tile),)   # ragged last tile handled by Pallas masking

    # VMEM limit: blocks + temps + resident table + headroom, capped below the
    # physical per-core capacity (64 MiB on v7x, 128 MiB on v5e/v6e).
    needed = per_row * tile + table_bytes + (16 << 20)
    vmem_limit = int(min(vmem_cap - (4 << 20), max(32 << 20, needed)))

    cost = pl.CostEstimate(
        flops=int(2 * E * k_pad * R),
        transcendentals=0,
        bytes_accessed=int(
            E * feat_dim * feats.dtype.itemsize
            + E * 4                                    # edge ids
            + k_pad * R * 4                            # relation table
            + E * out_dim * jnp.dtype(out_dtype).itemsize),
    )

    out = pl.pallas_call(
        _final_predictor_kernel,
        out_shape=jax.ShapeDtypeStruct((E, out_dim), out_dtype),
        grid_spec=pltpu.PrefetchScalarGridSpec(
            num_scalar_prefetch=0,
            grid=grid,
            in_specs=[
                pl.BlockSpec((tile, feat_dim), lambda i: (i, 0)),   # packed feats
                pl.BlockSpec((1, tile), lambda i: (0, i)),          # edge ids (row)
                # Constant block index: table stays VMEM-resident across the
                # grid (the second pipeline buffer it carries is ~64 KiB —
                # negligible, so default buffering is kept for compile safety).
                pl.BlockSpec((k_pad, R), lambda i: (0, 0)),
            ],
            out_specs=pl.BlockSpec((tile, out_dim), lambda i: (i, 0)),
        ),
        compiler_params=pltpu.CompilerParams(
            dimension_semantics=("parallel",),        # shards edges on v7x megacore
            vmem_limit_bytes=vmem_limit),
        cost_estimate=cost,
    )(feats, et_row, rel_f32)

    return out


def final_predictor_forward(graph=None, triplets=None):
    # TODO(synk): reference forward() body is `pass` (a no-op); the kernel
    # implements u_op_v's 'score' computation, which is the real work.
    return None


if __name__ == "__main__":
    key = jax.random.PRNGKey(0)
    k1, k2, k3, k4, k5, k6 = jax.random.split(key, 6)

    # Small synthetic "graph edge batch" consistent with u_op_v.
    E = 20          # number of edges (deliberately NOT a multiple of the tile)
    D1 = 32         # 'intra' node feature dim
    D2 = 32         # 'repr' node feature dim
    NUM_RELS = 8    # num_rels
    REL_DIM = 32    # rel_emb_dim

    src_intra = jax.random.normal(k1, (E, D1), dtype=jnp.float32)
    dst_intra = jax.random.normal(k2, (E, D1), dtype=jnp.float32)
    src_repr = jax.random.normal(k3, (E, D2), dtype=jnp.float32)
    dst_repr = jax.random.normal(k4, (E, D2), dtype=jnp.float32)
    edge_type = jax.random.randint(k5, (E, 1), 0, NUM_RELS, dtype=jnp.int32)

    # nn.Embedding(num_rels, rel_emb_dim) default init ~ N(0, 1), deterministic here.
    rel_emb = jax.random.normal(k6, (NUM_RELS, REL_DIM), dtype=jnp.float32)

    score = final_predictor_u_op_v(src_intra, dst_intra, src_repr, dst_repr,
                                   edge_type, rel_emb)
    score = jax.block_until_ready(score)

    # Pure-JAX reference check.
    ref = jnp.concatenate(
        [src_intra, dst_intra, src_repr, dst_repr, rel_emb[edge_type[:, 0]]],
        axis=1)
    assert score.shape == (E, 2 * D1 + 2 * D2 + REL_DIM)
    assert jnp.allclose(score, ref, atol=1e-5), "mismatch vs reference"

    # forward() in the reference module is a no-op.
    assert final_predictor_forward(None, None) is None

    print("KERNEL_OK")
</pallas_src>

<mosaic_0001>
module attributes {stable_mosaic.version = 11 : i64} {
  func.func @_final_predictor_kernel(%arg0: i32, %arg1: memref<128x128xf32, #tpu.memory_space<vmem>>, %arg2: memref<1x128xi32, #tpu.memory_space<vmem>>, %arg3: memref<128x32xf32, #tpu.memory_space<vmem>>, %arg4: memref<128x160xf32, #tpu.memory_space<vmem>>) attributes {dimension_semantics = [#tpu.dimension_semantics<parallel>], iteration_bounds = array<i64: 1>, scalar_prefetch = 0 : i64, scratch_operands = 0 : i64, tpu.core_type = #tpu.core_type<tc>, window_params = [{transform_indices = @transform_0, window_bounds = array<i64: 128, 128>}, {transform_indices = @transform_1, window_bounds = array<i64: 1, 128>}, {pipeline_mode = #tpu.pipeline_mode<synchronous>, transform_indices = @transform_2, window_bounds = array<i64: 128, 32>}, {transform_indices = @transform_3, window_bounds = array<i64: 128, 160>}]} {
    %0 = tpu.iota {dimensions = array<i32: 0>} : vector<128x128xi32>
    %c0 = arith.constant 0 : index
    %c0_0 = arith.constant 0 : index
    %1 = vector.load %arg2[%c0, %c0_0] : memref<1x128xi32, #tpu.memory_space<vmem>>, vector<1x128xi32>
    %2 = vector.broadcast %1 : vector<1x128xi32> to vector<128x128xi32>
    %3 = arith.cmpi eq, %0, %2 : vector<128x128xi32>
    %4 = arith.extui %3 : vector<128x128xi1> to vector<128x128xi32>
    %5 = arith.sitofp %4 : vector<128x128xi32> to vector<128x128xf32>
    %6 = tpu.transpose %5, [1, 0] : vector<128x128xf32> -> vector<128x128xf32>
    %c0_1 = arith.constant 0 : index
    %c0_2 = arith.constant 0 : index
    %7 = vector.load %arg3[%c0_1, %c0_2] : memref<128x32xf32, #tpu.memory_space<vmem>>, vector<128x32xf32>
    %cst = arith.constant dense<0.000000e+00> : vector<128x32xf32>
    %8 = tpu.matmul %6, %7, %cst {dimension_numbers = #tpu.dot_dimension_numbers<[1], [0], [0], [1], [0, 0, 1, 1], [], []>} : vector<128x128xf32>, vector<128x32xf32>, vector<128x32xf32> -> vector<128x32xf32>
    %c0_3 = arith.constant 0 : index
    %c0_4 = arith.constant 0 : index
    %9 = vector.load %arg1[%c0_3, %c0_4] : memref<128x128xf32, #tpu.memory_space<vmem>>, vector<128x128xf32>
    %10 = tpu.concatenate %9, %8 in 1 : vector<128x128xf32>, vector<128x32xf32> -> vector<128x160xf32>
    %c0_5 = arith.constant 0 : index
    %c0_6 = arith.constant 0 : index
    %11 = vector.load %arg4[%c0_5, %c0_6] : memref<128x160xf32, #tpu.memory_space<vmem>>, vector<128x160xf32>
    tpu.vector_store %arg4[%c0_5, %c0_6], %10 {strides = array<i32>} : memref<128x160xf32, #tpu.memory_space<vmem>>, vector<128x160xf32>,
    return
  }
  func.func @transform_0(%arg0: i32) -> (i32, i32) {
    %c0_i32 = arith.constant 0 : i32
    %c0_i32_0 = arith.constant 0 : i32
    return %arg0, %c0_i32 : i32, i32
  }
  func.func @transform_1(%arg0: i32) -> (i32, i32) {
    %c0_i32 = arith.constant 0 : i32
    %c0_i32_0 = arith.constant 0 : i32
    return %c0_i32, %arg0 : i32, i32
  }
  func.func @transform_2(%arg0: i32) -> (i32, i32) {
    %c0_i32 = arith.constant 0 : i32
    %c0_i32_0 = arith.constant 0 : i32
    %c0_i32_1 = arith.constant 0 : i32
    return %c0_i32, %c0_i32_0 : i32, i32
  }
  func.func @transform_3(%arg0: i32) -> (i32, i32) {
    %c0_i32 = arith.constant 0 : i32
    %c0_i32_0 = arith.constant 0 : i32
    return %arg0, %c0_i32 : i32, i32
  }
}

</mosaic_0001>

<llo_original>
// kernel: tpu_custom_call.1
$region0: #{tpu_custom_call.1}
  #allocation0 [shape = 'u32[]', space=smem, size = 0x4, offset = 0x4, fixed_abs, tag = 'smem constant byte address 0x4 - core index']
  #allocation1 [shape = 'u32[72,128]{1,0:T(1,128)}', space=vmem, size = 0x9000, scoped, tag = 'internal scratch']
  %s0 = inlined_call_operand.vmem [shape: f32[20,128], index: 0, kind: input, shape index: {}]
  %s1 = inlined_call_operand.vmem [shape: s32[1,20], index: 1, kind: input, shape index: {}]
  %s2 = inlined_call_operand.vmem [shape: f32[128,32], index: 2, kind: input, shape index: {}]
  %s3 = inlined_call_operand.hbm [shape: f32[20,160], index: 3, kind: output, shape index: {}]
  %s4 = sld [smem:[#allocation0]]
  $region22: #{tpu_custom_call.1} parent=0
    _
  %s6 = ssub.s32 1, %s4
  %s7 = scalar_select 0, %s6, %s4
  $region1: #{tpu_custom_call.1} parent=0
    #allocation2 [shape = 'u8[131072]{0}', space=vmem, size = 0x20000, scoped, tag = 'output window, operand 0, single buffered']
    #allocation3 [shape = 's32[1]{0}', space=sflag, size = 0x4, scoped, tag = 'scoped memory for tpu_custom_call.1']
    %8 = vsyncpa [#allocation3], 0
    // Predicated region
    $region2: #{tpu_custom_call.1} parent=1 // pred_check
      _
    $region3: #{tpu_custom_call.1} parent=1 // pred_check_branch
      %10 = sbr.rel (0) target = $region5
    $region4: #{tpu_custom_call.1} parent=1 // pred_region
      _
    $region5: #{tpu_custom_call.1} parent=1 // pred_fallthru
      _
    // Predicated region
    $region6: #{tpu_custom_call.1} parent=1 // pred_check
      _
    $region7: #{tpu_custom_call.1} parent=1 // pred_check_branch
      %12 = sbr.rel (0) target = $region9
    $region8: #{tpu_custom_call.1} parent=1 // pred_region
      _
    $region9: #{tpu_custom_call.1} parent=1 // pred_fallthru
      _
    // Predicated region
    $region10: #{tpu_custom_call.1} parent=1 // pred_check
      _
    $region11: #{tpu_custom_call.1} parent=1 // pred_check_branch
      %14 = sbr.rel (0) target = $region13
    $region12: #{tpu_custom_call.1} parent=1 // pred_region
      _
    $region13: #{tpu_custom_call.1} parent=1 // pred_fallthru
      _
    %v15 = vlaneseq
    %v16 = vshrl.u32 %v15, 7
    %v17 = vadd.s32 %v16, 8
    %v18 = vadd.s32 %v16, 16
    %v19 = vadd.s32 %v16, 24
    %v20 = vadd.s32 %v16, 32
    %v21 = vadd.s32 %v16, 40
    %v22 = vadd.s32 %v16, 48
    %v23 = vadd.s32 %v16, 56
    %v24 = vadd.s32 %v16, 64
    %v25 = vadd.s32 %v16, 72
    %v26 = vadd.s32 %v16, 80
    %v27 = vadd.s32 %v16, 88
    %v28 = vadd.s32 %v16, 96
    %v29 = vadd.s32 %v16, 104
    %v30 = vadd.s32 %v16, 112
    %v31 = vadd.s32 %v16, 120
    %v32 = vld [vmem:[%s1] sm:$0x1]
    %v33 = vperm.slane %v32, 0
    %vm34 = vcmp.eq.s32.totalorder %v16, %v33
    %vm35 = vcmp.eq.s32.totalorder %v17, %v33
    %vm36 = vcmp.eq.s32.totalorder %v18, %v33
    %vm37 = vcmp.eq.s32.totalorder %v19, %v33
    %vm38 = vcmp.eq.s32.totalorder %v20, %v33
    %vm39 = vcmp.eq.s32.totalorder %v21, %v33
    %vm40 = vcmp.eq.s32.totalorder %v22, %v33
    %vm41 = vcmp.eq.s32.totalorder %v23, %v33
    %vm42 = vcmp.eq.s32.totalorder %v24, %v33
    %vm43 = vcmp.eq.s32.totalorder %v25, %v33
    %vm44 = vcmp.eq.s32.totalorder %v26, %v33
    %vm45 = vcmp.eq.s32.totalorder %v27, %v33
    %vm46 = vcmp.eq.s32.totalorder %v28, %v33
    %vm47 = vcmp.eq.s32.totalorder %v29, %v33
    %vm48 = vcmp.eq.s32.totalorder %v30, %v33
    %vm49 = vcmp.eq.s32.totalorder %v31, %v33
    %v50 = vsel %vm34, 1, 0
    %v51 = vsel %vm35, 1, 0
    %v52 = vsel %vm36, 1, 0
    %v53 = vsel %vm37, 1, 0
    %v54 = vsel %vm38, 1, 0
    %v55 = vsel %vm39, 1, 0
    %v56 = vsel %vm40, 1, 0
    %v57 = vsel %vm41, 1, 0
    %v58 = vsel %vm42, 1, 0
    %v59 = vsel %vm43, 1, 0
    %v60 = vsel %vm44, 1, 0
    %v61 = vsel %vm45, 1, 0
    %v62 = vsel %vm46, 1, 0
    %v63 = vsel %vm47, 1, 0
    %v64 = vsel %vm48, 1, 0
    %v65 = vsel %vm49, 1, 0
    %v66 = vcvt.s32.f32 %v50
    %v67 = vcvt.s32.f32 %v51
    %v68 = vcvt.s32.f32 %v52
    %v69 = vcvt.s32.f32 %v53
    %v70 = vcvt.s32.f32 %v54
    %v71 = vcvt.s32.f32 %v55
    %v72 = vcvt.s32.f32 %v56
    %v73 = vcvt.s32.f32 %v57
    %v74 = vcvt.s32.f32 %v58
    %v75 = vcvt.s32.f32 %v59
    %v76 = vcvt.s32.f32 %v60
    %v77 = vcvt.s32.f32 %v61
    %v78 = vcvt.s32.f32 %v62
    %v79 = vcvt.s32.f32 %v63
    %v80 = vcvt.s32.f32 %v64
    %v81 = vcvt.s32.f32 %v65
    %82 = vxpose.xlu0.b32.start [1/16] %v66, 128
    %83 = vxpose.xlu0.b32.cont [2/16] %v67, 128
    %84 = vxpose.xlu0.b32.cont [3/16] %v68, 128
    %85 = vxpose.xlu0.b32.cont [4/16] %v69, 128
    %86 = vxpose.xlu0.b32.cont [5/16] %v70, 128
    %87 = vxpose.xlu0.b32.cont [6/16] %v71, 128
    %88 = vxpose.xlu0.b32.cont [7/16] %v72, 128
    %89 = vxpose.xlu0.b32.cont [8/16] %v73, 128
    %90 = vxpose.xlu0.b32.cont [9/16] %v74, 128
    %91 = vxpose.xlu0.b32.cont [10/16] %v75, 128
    %92 = vxpose.xlu0.b32.cont [11/16] %v76, 128
    %93 = vxpose.xlu0.b32.cont [12/16] %v77, 128
    %94 = vxpose.xlu0.b32.cont [13/16] %v78, 128
    %95 = vxpose.xlu0.b32.cont [14/16] %v79, 128
    %96 = vxpose.xlu0.b32.cont [15/16] %v80, 128
    %97 = vxpose.xlu0.b32.end [16/16] %v81, 128
    %v98 = vpop.trf.xlu0
    %v99 = vpop.trf.xlu0
    %v100 = vpop.trf.xlu0
    %v101 = vpop.trf.xlu0
    %v102 = vpop.trf.xlu0
    %v103 = vpop.trf.xlu0
    %v104 = vpop.trf.xlu0
    %v105 = vpop.trf.xlu0
    %v106 = vpop.trf.xlu0
    %v107 = vpop.trf.xlu0
    %v108 = vpop.trf.xlu0
    %v109 = vpop.trf.xlu0
    %v110 = vpop.trf.xlu0
    %v111 = vpop.trf.xlu0
    %v112 = vpop.trf.xlu0
    %v113 = vpop.trf.xlu0
    %v114 = vld [vmem:[%s2] sm:$0xff]
    %v115 = vld [vmem:[%s2 + $0x8] sm:$0xff]
    %v116 = vld [vmem:[%s2 + $0x10] sm:$0xff]
    %v117 = vld [vmem:[%s2 + $0x18] sm:$0xff]
    %v118 = vld [vmem:[%s2 + $0x20] sm:$0xff]
    %v119 = vld [vmem:[%s2 + $0x28] sm:$0xff]
    %v120 = vld [vmem:[%s2 + $0x30] sm:$0xff]
    %v121 = vld [vmem:[%s2 + $0x38] sm:$0xff]
    %v122 = vld [vmem:[%s2 + $0x40] sm:$0xff]
    %v123 = vld [vmem:[%s2 + $0x48] sm:$0xff]
    %v124 = vld [vmem:[%s2 + $0x50] sm:$0xff]
    %v125 = vld [vmem:[%s2 + $0x58] sm:$0xff]
    %v126 = vld [vmem:[%s2 + $0x60] sm:$0xff]
    %v127 = vld [vmem:[%s2 + $0x68] sm:$0xff]
    %v128 = vld [vmem:[%s2 + $0x70] sm:$0xff]
    %v129 = vld [vmem:[%s2 + $0x78] sm:$0xff]
    %130 = vmatpush.msra.mxu0 %v129
    %131 = vmatpush.msra.mxu0 %v128
    %132 = vmatpush.msra.mxu0 %v127
    %133 = vmatpush.msra.mxu0 %v126
    %134 = vmatpush.msra.mxu0 %v125
    %135 = vmatpush.msra.mxu0 %v124
    %136 = vmatpush.msra.mxu0 %v123
    %137 = vmatpush.msra.mxu0 %v122
    %138 = vmatpush.msra.mxu0 %v121
    %139 = vmatpush.msra.mxu0 %v120
    %140 = vmatpush.msra.mxu0 %v119
    %141 = vmatpush.msra.mxu0 %v118
    %142 = vmatpush.msra.mxu0 %v117
    %143 = vmatpush.msra.mxu0 %v116
    %144 = vmatpush.msra.mxu0 %v115
    %145 = vmatpush.msra.mxu0 %v114
    %146 = vmatmul.f32.gmra.mxu0 %v98
    %v147 = vpop.f32.mrf.mxu0
    %v148 = vadd.f32 0.0, %v147
    %149 = vmatmul.f32.gmra.mxu0 %v99
    %v150 = vpop.f32.mrf.mxu0
    %v151 = vadd.f32 0.0, %v150
    %152 = vmatmul.f32.gmra.mxu0 %v100
    %v153 = vpop.f32.mrf.mxu0
    %v154 = vadd.f32 0.0, %v153
    %155 = vmatmul.f32.gmra.mxu0 %v101
    %v156 = vpop.f32.mrf.mxu0
    %v157 = vadd.f32 0.0, %v156
    %158 = vmatmul.f32.gmra.mxu0 %v102
    %v159 = vpop.f32.mrf.mxu0
    %v160 = vadd.f32 0.0, %v159
    %161 = vmatmul.f32.gmra.mxu0 %v103
    %v162 = vpop.f32.mrf.mxu0
    %v163 = vadd.f32 0.0, %v162
    %164 = vmatmul.f32.gmra.mxu0 %v104
    %v165 = vpop.f32.mrf.mxu0
    %v166 = vadd.f32 0.0, %v165
    %167 = vmatmul.f32.gmra.mxu0 %v105
    %v168 = vpop.f32.mrf.mxu0
    %v169 = vadd.f32 0.0, %v168
    %170 = vmatmul.f32.gmra.mxu0 %v106
    %v171 = vpop.f32.mrf.mxu0
    %v172 = vadd.f32 0.0, %v171
    %173 = vmatmul.f32.gmra.mxu0 %v107
    %v174 = vpop.f32.mrf.mxu0
    %v175 = vadd.f32 0.0, %v174
    %176 = vmatmul.f32.gmra.mxu0 %v108
    %v177 = vpop.f32.mrf.mxu0
    %v178 = vadd.f32 0.0, %v177
    %179 = vmatmul.f32.gmra.mxu0 %v109
    %v180 = vpop.f32.mrf.mxu0
    %v181 = vadd.f32 0.0, %v180
    %182 = vmatmul.f32.gmra.mxu0 %v110
    %v183 = vpop.f32.mrf.mxu0
    %v184 = vadd.f32 0.0, %v183
    %185 = vmatmul.f32.gmra.mxu0 %v111
    %v186 = vpop.f32.mrf.mxu0
    %v187 = vadd.f32 0.0, %v186
    %188 = vmatmul.f32.gmra.mxu0 %v112
    %v189 = vpop.f32.mrf.mxu0
    %v190 = vadd.f32 0.0, %v189
    %191 = vmatmul.f32.gmra.mxu0 %v113
    %v192 = vpop.f32.mrf.mxu0
    %v193 = vadd.f32 0.0, %v192
    %194 = vdwg.mxu0
    %v195 = vld [vmem:[%s0] sm:$0xff]
    %v196 = vld [vmem:[%s0 + $0x8] sm:$0xff]
    %v197 = vld [vmem:[%s0 + $0x10] sm:$0xff]
    %v198 = vld [vmem:[%s0 + $0x18] sm:$0xff]
    %v199 = vld [vmem:[%s0 + $0x20] sm:$0xff]
    %v200 = vld [vmem:[%s0 + $0x28] sm:$0xff]
    %v201 = vld [vmem:[%s0 + $0x30] sm:$0xff]
    %v202 = vld [vmem:[%s0 + $0x38] sm:$0xff]
    %v203 = vld [vmem:[%s0 + $0x40] sm:$0xff]
    %v204 = vld [vmem:[%s0 + $0x48] sm:$0xff]
    %v205 = vld [vmem:[%s0 + $0x50] sm:$0xff]
    %v206 = vld [vmem:[%s0 + $0x58] sm:$0xff]
    %v207 = vld [vmem:[%s0 + $0x60] sm:$0xff]
    %v208 = vld [vmem:[%s0 + $0x68] sm:$0xff]
    %v209 = vld [vmem:[%s0 + $0x70] sm:$0xff]
    %v210 = vld [vmem:[%s0 + $0x78] sm:$0xff]
    %211 = vst [vmem:[#allocation2] sm:$0xff] %v195
    %vm212 = vcmask 261120
    %213 = vst.msk [vmem:[#allocation2 + $0x8] sm:$0xff] %vm212, %v148
    %214 = vst [vmem:[#allocation2 + $0x10] sm:$0xff] %v196
    %215 = vst.msk [vmem:[#allocation2 + $0x18] sm:$0xff] %vm212, %v151
    %216 = vst [vmem:[#allocation2 + $0x20] sm:$0xff] %v197
    %217 = vst.msk [vmem:[#allocation2 + $0x28] sm:$0xff] %vm212, %v154
    %218 = vst [vmem:[#allocation2 + $0x30] sm:$0xff] %v198
    %219 = vst.msk [vmem:[#allocation2 + $0x38] sm:$0xff] %vm212, %v157
    %220 = vst [vmem:[#allocation2 + $0x40] sm:$0xff] %v199
    %221 = vst.msk [vmem:[#allocation2 + $0x48] sm:$0xff] %vm212, %v160
    %222 = vst [vmem:[#allocation2 + $0x50] sm:$0xff] %v200
    %223 = vst.msk [vmem:[#allocation2 + $0x58] sm:$0xff] %vm212, %v163
    %224 = vst [vmem:[#allocation2 + $0x60] sm:$0xff] %v201
    %225 = vst.msk [vmem:[#allocation2 + $0x68] sm:$0xff] %vm212, %v166
    %226 = vst [vmem:[#allocation2 + $0x70] sm:$0xff] %v202
    %227 = vst.msk [vmem:[#allocation2 + $0x78] sm:$0xff] %vm212, %v169
    %228 = vst [vmem:[#allocation2 + $0x80] sm:$0xff] %v203
    %229 = vst.msk [vmem:[#allocation2 + $0x88] sm:$0xff] %vm212, %v172
    %230 = vst [vmem:[#allocation2 + $0x90] sm:$0xff] %v204
    %231 = vst.msk [vmem:[#allocation2 + $0x98] sm:$0xff] %vm212, %v175
    %232 = vst [vmem:[#allocation2 + $0xa0] sm:$0xff] %v205
    %233 = vst.msk [vmem:[#allocation2 + $0xa8] sm:$0xff] %vm212, %v178
    %234 = vst [vmem:[#allocation2 + $0xb0] sm:$0xff] %v206
    %235 = vst.msk [vmem:[#allocation2 + $0xb8] sm:$0xff] %vm212, %v181
    %236 = vst [vmem:[#allocation2 + $0xc0] sm:$0xff] %v207
    %237 = vst.msk [vmem:[#allocation2 + $0xc8] sm:$0xff] %vm212, %v184
    %238 = vst [vmem:[#allocation2 + $0xd0] sm:$0xff] %v208
    %239 = vst.msk [vmem:[#allocation2 + $0xd8] sm:$0xff] %vm212, %v187
    %240 = vst [vmem:[#allocation2 + $0xe0] sm:$0xff] %v209
    %241 = vst.msk [vmem:[#allocation2 + $0xe8] sm:$0xff] %vm212, %v190
    %242 = vst [vmem:[#allocation2 + $0xf0] sm:$0xff] %v210
    %243 = vst.msk [vmem:[#allocation2 + $0xf8] sm:$0xff] %vm212, %v193
    // Predicated region
    $region14: #{tpu_custom_call.1} parent=1 // pred_check
      _
    $region15: #{tpu_custom_call.1} parent=1 // pred_check_branch
      %245 = sbr.rel (0) target = $region17
    $region16: #{tpu_custom_call.1} parent=1 // pred_region
      %247 = vsyncadd [#allocation3], 3328
      %s248 = sshll.u32 [#allocation2], 4
      %s249 = int_to_ptr.vmem [resolvable:$true] %s248
      %s250 = sshll.u32 %s3, 4
      %s251 = int_to_ptr.hbm [resolvable:$true] %s250
      %256 = dma.vmem_to_hbm [thread:$0]  %s249, 768, %s251, [#allocation3], 256, 256, 16
    $region17: #{tpu_custom_call.1} parent=1 // pred_fallthru
      _
    // Predicated region
    $region18: #{tpu_custom_call.1} parent=1 // pred_check
      _
    $region19: #{tpu_custom_call.1} parent=1 // pred_check_branch
      %258 = sbr.rel (0) target = $region21
    $region20: #{tpu_custom_call.1} parent=1 // pred_region
      %260 = dma.done [#allocation3], 4096
    $region21: #{tpu_custom_call.1} parent=1 // pred_fallthru
      _
    %261 = vsyncpa [#allocation3], 1

</llo_original>
